<compile_context>
chip_gen: v5e
topology: v5e:2x2
jax: 0.10.0
libtpu: 0.0.40
codegen_flags: <defaults>
</compile_context>

<pallas_src>
import jax
import jax.numpy as jnp
from jax.experimental import pallas as pl
from jax.experimental.pallas import tpu as pltpu


# ---------------------------------------------------------------------------
# Mish
# ---------------------------------------------------------------------------
def _mish_fast(x):
    """mish(x) = x * tanh(softplus(x)) with ONE exp (EUP) and ONE divide.

    With a = exp(-|x|):
      x >= 0: tanh(softplus(x)) = (1 + 2a) / (1 + 2a + 2a^2)
      x <  0: tanh(softplus(x)) = (2a + a^2) / (2 + 2a + a^2)
    Numerator / denominator are selected first so only a single division is issued.
    # TODO(synk): pl.reciprocal(den, approx=True) would push the divide to the idle EUP slot,
    #             but its ~2^-12 relative error is marginal against the 1e-4 parity check.
    """
    a = jnp.exp(-jnp.abs(x))
    a2 = a * a
    pos = x >= 0.0
    num = jnp.where(pos, 1.0 + 2.0 * a, 2.0 * a + a2)
    den = jnp.where(pos, 1.0 + 2.0 * a + 2.0 * a2, 2.0 + 2.0 * a + a2)
    return x * (num / den)


def _mish_ref(x):
    sp = jnp.maximum(x, 0.0) + jnp.log1p(jnp.exp(-jnp.abs(x)))
    return x * jnp.tanh(sp)


# ---------------------------------------------------------------------------
# kernel factory (static shapes captured by closure)
# ---------------------------------------------------------------------------
def _make_kernel(TM, H, W, Cin, Cmid, Cout, K, act, mxu_dtype):
    Wf = W * Cmid
    pad = (K - 1) // 2
    f32 = jnp.float32

    def kernel(x_ref, wpw_ref, bpw_ref, wdw_ref, bdw_ref, s_ref, o_ref):
        # ---- pointwise 1x1 conv: ONE lane-dense MXU matmul over all TM rows ------------
        # (TM, W*Cin) @ (W*Cin, W*Cmid block-diagonal) -> (TM, W*Cmid), f32 accumulate.
        y = jnp.dot(x_ref[...], wpw_ref[...], preferred_element_type=f32) + bpw_ref[...]
        if act:
            y = _mish_fast(y)                                        # (TM, Wf) f32

        # ---- depthwise KxK conv as K accumulated MXU matmuls ---------------------------
        # kw taps + per-channel weights live in banded (Wf, Wf) matrices (wrapper-built);
        # kh taps are sublane rolls (XLU) gated by an image-boundary mask.  The mask also
        # isolates the images stacked along the row axis and neutralises the roll wrap, so
        # tile edges (== image edges) see exact zero padding — no halo rows needed.
        y_mx = y.astype(mxu_dtype)
        rmod = jax.lax.broadcasted_iota(jnp.int32, (TM, 1), 0) % H   # row index within image
        acc = jnp.zeros((TM, Wf), f32) + bdw_ref[...]                # bias added once
        for kh in range(K):
            dh = kh - pad
            if dh == 0:
                tap = y_mx
            else:
                rolled = pltpu.roll(y, shift=(-dh) % TM, axis=0)     # XLU sublane rotate
                valid = jnp.logical_and(rmod + dh >= 0, rmod + dh < H)
                tap = jnp.where(valid, rolled, 0.0).astype(mxu_dtype)
            acc = acc + jnp.dot(tap, wdw_ref[kh], preferred_element_type=f32)
        z = _mish_fast(acc) if act else acc                          # (TM, Wf) f32

        # ---- channel concat == lane interleave via ONE stacked permutation matmul ------
        yz = jnp.concatenate([y.astype(mxu_dtype), z.astype(mxu_dtype)], axis=-1)
        out = jnp.dot(yz, s_ref[...], preferred_element_type=f32)
        o_ref[...] = out.astype(o_ref.dtype)                         # (TM, W*Cout) lane-dense

    return kernel


# ---------------------------------------------------------------------------
# wrapper-side weight packing (tiny, done once per call outside the kernel)
# ---------------------------------------------------------------------------
def _pack_params(params, W, mxu_dtype):
    """Pack module weights for the flattened (rows, W*C) lane-dense layout.
    Matmul weights are cast to `mxu_dtype`; biases stay f32."""
    w_pw = params["w_pw"].astype(jnp.float32)     # (Cin, Cmid)
    b_pw = params["b_pw"].astype(jnp.float32)     # (Cmid,)
    w_dw = params["w_dw"].astype(jnp.float32)     # (K, K, Cmid)
    b_dw = params["b_dw"].astype(jnp.float32)     # (Cmid,)
    Cin, Cmid = w_pw.shape
    K = w_dw.shape[0]
    pad = (K - 1) // 2
    eye_w = jnp.eye(W, dtype=jnp.float32)

    # pointwise 1x1 conv on the flattened layout == block-diagonal kron weight
    # (see TODO at top for the large-W / large-Cin direct-matmul variant).
    wpw_kron = jnp.kron(eye_w, w_pw).astype(mxu_dtype)            # (W*Cin, W*Cmid)
    bpw_flat = jnp.tile(b_pw[None, :], (1, W))                    # (1, W*Cmid) f32

    # depthwise: fold the kw taps + per-channel weights into ONE banded (Wf, Wf) block
    # matrix per kh -> the depthwise conv becomes K accumulated MXU matmuls.
    bands = []
    for kh in range(K):
        mat = jnp.zeros((W * Cmid, W * Cmid), jnp.float32)
        for kw in range(K):
            dw = kw - pad
            mat = mat + jnp.kron(jnp.eye(W, k=-dw, dtype=jnp.float32),
                                 jnp.diag(w_dw[kh, kw]))
        bands.append(mat)
    wdw_banded = jnp.stack(bands, axis=0).astype(mxu_dtype)       # (K, W*Cmid, W*Cmid)
    bdw_flat = jnp.tile(b_dw[None, :], (1, W))                    # (1, W*Cmid) f32

    # channel concat == lane interleave, as a single STACKED permutation matmul weight.
    e1 = jnp.concatenate([jnp.eye(Cmid), jnp.zeros((Cmid, Cmid))], axis=1)
    e2 = jnp.concatenate([jnp.zeros((Cmid, Cmid)), jnp.eye(Cmid)], axis=1)
    s_stack = jnp.concatenate([jnp.kron(eye_w, e1), jnp.kron(eye_w, e2)],
                              axis=0).astype(mxu_dtype)           # (2*W*Cmid, W*Cout)
    return [wpw_kron, bpw_flat, wdw_banded, bdw_flat, s_stack]


# ---------------------------------------------------------------------------
# tiling / VMEM budgeting
# ---------------------------------------------------------------------------
def _choose_images_per_tile(N, H, W, Cin, Cmid, Cout,
                            vmem_budget_bytes=24 << 20, max_rows_per_tile=512):
    """How many whole images share one grid step.  Tile boundaries always coincide with
    image boundaries, so no halo exchange is ever needed (zero padding == the mask)."""
    bytes_per_row = 4 * (W * Cin + 6 * W * Cmid + 2 * W * Cout)   # rough f32 working set
    rows_cap = max(1, min(max_rows_per_tile, vmem_budget_bytes // bytes_per_row))
    cap = max(1, min(N, rows_cap // H))
    for ipt in range(cap, 0, -1):
        # exact tiling + sublane-aligned block rows (or one full-array block, always legal)
        if N % ipt == 0 and ((ipt * H) % 8 == 0 or ipt * H == N * H):
            return ipt
    return N


def _vmem_limit_bytes(TM, W, Cin, Cmid, Cout, packed):
    blocks = 2 * 4 * TM * (W * Cin + W * Cout)                    # double-buffered in/out
    weights = 2 * sum(int(a.size) * a.dtype.itemsize for a in packed)
    interm = 4 * TM * (10 * W * Cmid + W * Cout)                  # y/z/acc/rolled taps/concat
    est = 2 * (blocks + weights + interm)                         # 2x headroom
    # floor 32 MiB (raises v5e's 16 MiB default), cap 48 MiB (fits v7x's 64 MiB VMEM).
    return int(min(48 << 20, max(32 << 20, est)))


# ---------------------------------------------------------------------------
# public wrappers
# ---------------------------------------------------------------------------
def ghost_conv_nhwc(x_nhwc, params, act=True, compute_dtype=None,
                    vmem_budget_bytes=24 << 20, max_rows_per_tile=512):
    """GhostConv forward, NHWC in / NHWC out (TPU-native; no layout transposes).

    Runs on a flattened (N*H, W*C) view: the reshapes are free row-major views and loads /
    stores are 128-lane dense when W*Cin and W*Cout are multiples of 128 (other widths stay
    correct but fall back to partial stores).

    compute_dtype: MXU/DMA dtype for activations + packed matmul weights (jnp.bfloat16 on
    v6e/v7x halves HBM bytes and doubles MXU rate); accumulation, biases and Mish stay f32.
    """
    N, H, W, Cin = x_nhwc.shape
    w_pw = params["w_pw"]
    assert w_pw.shape[0] == Cin, f"w_pw expects Cin={w_pw.shape[0]}, got {Cin}"
    Cmid = w_pw.shape[1]
    Cout = 2 * Cmid
    K = params["w_dw"].shape[0]
    assert params["w_dw"].shape == (K, K, Cmid), params["w_dw"].shape
    assert params["b_pw"].shape == (Cmid,) and params["b_dw"].shape == (Cmid,)
    assert K % 2 == 1, "depthwise kernel size must be odd (SAME padding)"

    cdt = jnp.dtype(compute_dtype) if compute_dtype is not None else jnp.dtype(x_nhwc.dtype)
    packed = _pack_params(params, W, cdt)

    ipt = _choose_images_per_tile(N, H, W, Cin, Cmid, Cout,
                                  vmem_budget_bytes, max_rows_per_tile)
    TM = ipt * H                      # rows per grid step (whole images only -> no halos)
    M = N * H
    grid = (N // ipt,)                # demo: (1,); production: many independent row tiles

    x_flat = x_nhwc.reshape(M, W * Cin).astype(cdt)   # free view -> lane-dense blocks
    kernel = _make_kernel(TM, H, W, Cin, Cmid, Cout, K, act, cdt)

    def _const_spec(a):
        # Grid-invariant weights (constant index_map => fetched once).
        nd = a.ndim
        return pl.BlockSpec(a.shape, lambda i, _nd=nd: (0,) * _nd)

    grid_spec = pltpu.PrefetchScalarGridSpec(
        num_scalar_prefetch=0,
        grid=grid,
        in_specs=[pl.BlockSpec((TM, W * Cin), lambda i: (i, 0))]
        + [_const_spec(a) for a in packed],
        out_specs=pl.BlockSpec((TM, W * Cout), lambda i: (i, 0)),
    )
    out_flat = pl.pallas_call(
        kernel,
        out_shape=jax.ShapeDtypeStruct((M, W * Cout), x_nhwc.dtype),
        grid_spec=grid_spec,
        compiler_params=pltpu.CompilerParams(
            dimension_semantics=("parallel",),       # independent tiles -> megacore-friendly
            vmem_limit_bytes=_vmem_limit_bytes(TM, W, Cin, Cmid, Cout, packed),
        ),
    )(x_flat, *packed)
    return out_flat.reshape(N, H, W, Cout)


def ghost_conv_nchw(x_nchw, params, act=True, **kw):
    """PyTorch-layout convenience wrapper (NCHW in / NCHW out).  The transposes are glue;
    prefer ghost_conv_nhwc on the hot path."""
    x_nhwc = jnp.transpose(x_nchw, (0, 2, 3, 1))
    y = ghost_conv_nhwc(x_nhwc, params, act=act, **kw)
    return jnp.transpose(y, (0, 3, 1, 2))


# ---------------------------------------------------------------------------
# deterministic parameter construction (shapes per module __init__ defaults)
# ---------------------------------------------------------------------------
def init_params(key, in_channels, out_channels, dw_kernel_size=5):
    Cmid = out_channels // 2
    assert out_channels % 2 == 0
    k1, k2, k3, k4 = jax.random.split(key, 4)
    f = lambda k, s, scale=0.3: (scale * jax.random.normal(k, s)).astype(jnp.float32)
    return dict(
        w_pw=f(k1, (in_channels, Cmid)),                       # 1x1 conv weight (Cin, Cmid)
        b_pw=f(k2, (Cmid,), 0.1),
        w_dw=f(k3, (dw_kernel_size, dw_kernel_size, Cmid)),    # depthwise weight (K, K, Cmid)
        b_dw=f(k4, (Cmid,), 0.1),
    )


# ---------------------------------------------------------------------------
# pure-JAX reference (mirrors the PyTorch math; NHWC)
# ---------------------------------------------------------------------------
def _dwconv_ref(x, w, pad):
    K = w.shape[0]
    N, H, W_, C = x.shape
    xp = jnp.pad(x, ((0, 0), (pad, pad), (pad, pad), (0, 0)))
    acc = jnp.zeros_like(x)
    for kh in range(K):
        for kw in range(K):
            acc = acc + xp[:, kh:kh + H, kw:kw + W_, :] * w[kh, kw]
    return acc


def ghost_conv_ref_nhwc(x, p, act=True):
    a = _mish_ref if act else (lambda t: t)
    y = a(jnp.einsum("nhwc,cd->nhwd", x, p["w_pw"]) + p["b_pw"])
    pad = (p["w_dw"].shape[0] - 1) // 2
    z = a(_dwconv_ref(y, p["w_dw"], pad) + p["b_dw"])
    return jnp.concatenate([y, z], axis=-1)


if __name__ == "__main__":
    key = jax.random.PRNGKey(0)
    kx, kp = jax.random.split(key)

    # GhostConv(in_channels=8, out_channels=8, kernel_size=1, stride=1, dw_kernel_size=5)
    N, H, W, Cin, Cout = 2, 16, 16, 8, 8          # NHWC input; W*Cin = W*Cout = 128 (lane-dense)
    x = jax.random.normal(kx, (N, H, W, Cin), dtype=jnp.float32)
    params = init_params(kp, Cin, Cout)

    # f32 path (single grid step: batch folded into the matmul M dimension)
    out = jax.block_until_ready(ghost_conv_nhwc(x, params))
    ref = jax.block_until_ready(ghost_conv_ref_nhwc(x, params))
    assert out.shape == (N, H, W, Cout), out.shape
    err = float(jnp.max(jnp.abs(out - ref)))
    assert jnp.allclose(out, ref, atol=1e-4, rtol=1e-4), f"max abs err = {err}"

    # act=False branch (module arg) parity
    out_na = jax.block_until_ready(ghost_conv_nhwc(x, params, act=False))
    ref_na = ghost_conv_ref_nhwc(x, params, act=False)
    assert jnp.allclose(out_na, ref_na, atol=1e-4, rtol=1e-4)

    # bf16 MXU/DMA fast path (v6e/v7x), f32 accumulation — looser tolerance
    out_bf = jax.block_until_ready(ghost_conv_nhwc(x, params, compute_dtype=jnp.bfloat16))
    assert jnp.allclose(out_bf, ref, atol=5e-2, rtol=5e-2)

    # PyTorch-layout (NCHW) wrapper parity check
    x_nchw = jnp.transpose(x, (0, 3, 1, 2))
    out_nchw = jax.block_until_ready(ghost_conv_nchw(x_nchw, params))
    assert jnp.allclose(out_nchw, jnp.transpose(ref, (0, 3, 1, 2)), atol=1e-4, rtol=1e-4)

    print("KERNEL_OK")
</pallas_src>

<mosaic_0001>
module attributes {stable_mosaic.version = 11 : i64} {
  func.func @kernel(%arg0: i32, %arg1: memref<32x128xf32, #tpu.memory_space<vmem>>, %arg2: memref<128x64xf32, #tpu.memory_space<vmem>>, %arg3: memref<1x64xf32, #tpu.memory_space<vmem>>, %arg4: memref<5x64x64xf32, #tpu.memory_space<vmem>>, %arg5: memref<1x64xf32, #tpu.memory_space<vmem>>, %arg6: memref<128x128xf32, #tpu.memory_space<vmem>>, %arg7: memref<32x128xf32, #tpu.memory_space<vmem>>) attributes {dimension_semantics = [#tpu.dimension_semantics<parallel>], iteration_bounds = array<i64: 1>, scalar_prefetch = 0 : i64, scratch_operands = 0 : i64, tpu.core_type = #tpu.core_type<tc>, window_params = [{transform_indices = @transform_0, window_bounds = array<i64: 32, 128>}, {pipeline_mode = #tpu.pipeline_mode<synchronous>, transform_indices = @transform_1, window_bounds = array<i64: 128, 64>}, {pipeline_mode = #tpu.pipeline_mode<synchronous>, transform_indices = @transform_2, window_bounds = array<i64: 1, 64>}, {pipeline_mode = #tpu.pipeline_mode<synchronous>, transform_indices = @transform_3, window_bounds = array<i64: 5, 64, 64>}, {pipeline_mode = #tpu.pipeline_mode<synchronous>, transform_indices = @transform_4, window_bounds = array<i64: 1, 64>}, {pipeline_mode = #tpu.pipeline_mode<synchronous>, transform_indices = @transform_5, window_bounds = array<i64: 128, 128>}, {transform_indices = @transform_6, window_bounds = array<i64: 32, 128>}]} {
    %c0 = arith.constant 0 : index
    %c0_0 = arith.constant 0 : index
    %0 = vector.load %arg1[%c0, %c0_0] : memref<32x128xf32, #tpu.memory_space<vmem>>, vector<32x128xf32>
    %c0_1 = arith.constant 0 : index
    %c0_2 = arith.constant 0 : index
    %1 = vector.load %arg2[%c0_1, %c0_2] : memref<128x64xf32, #tpu.memory_space<vmem>>, vector<128x64xf32>
    %cst = arith.constant dense<0.000000e+00> : vector<32x64xf32>
    %2 = tpu.matmul %0, %1, %cst {dimension_numbers = #tpu.dot_dimension_numbers<[1], [0], [0], [1], [0, 0, 1, 1], [], []>} : vector<32x128xf32>, vector<128x64xf32>, vector<32x64xf32> -> vector<32x64xf32>
    %c0_3 = arith.constant 0 : index
    %c0_4 = arith.constant 0 : index
    %3 = vector.load %arg3[%c0_3, %c0_4] : memref<1x64xf32, #tpu.memory_space<vmem>>, vector<1x64xf32>
    %4 = vector.broadcast %3 : vector<1x64xf32> to vector<32x64xf32>
    %5 = arith.addf %2, %4 : vector<32x64xf32>
    %6 = math.absf %5 : vector<32x64xf32>
    %cst_5 = arith.constant 0.000000e+00 : f32
    %7 = vector.broadcast %cst_5 : f32 to vector<32x64xf32>
    %8 = arith.subf %7, %6 : vector<32x64xf32>
    %9 = math.exp %8 : vector<32x64xf32>
    %10 = arith.mulf %9, %9 : vector<32x64xf32>
    %cst_6 = arith.constant 0.000000e+00 : f32
    %11 = vector.broadcast %cst_6 : f32 to vector<32x64xf32>
    %12 = arith.cmpf oge, %5, %11 : vector<32x64xf32>
    %cst_7 = arith.constant 2.000000e+00 : f32
    %13 = vector.broadcast %cst_7 : f32 to vector<32x64xf32>
    %14 = arith.mulf %13, %9 : vector<32x64xf32>
    %cst_8 = arith.constant 1.000000e+00 : f32
    %15 = vector.broadcast %cst_8 : f32 to vector<32x64xf32>
    %16 = arith.addf %15, %14 : vector<32x64xf32>
    %cst_9 = arith.constant 2.000000e+00 : f32
    %17 = vector.broadcast %cst_9 : f32 to vector<32x64xf32>
    %18 = arith.mulf %17, %9 : vector<32x64xf32>
    %19 = arith.addf %18, %10 : vector<32x64xf32>
    %20 = arith.select %12, %16, %19 : vector<32x64xi1>, vector<32x64xf32>
    %cst_10 = arith.constant 2.000000e+00 : f32
    %21 = vector.broadcast %cst_10 : f32 to vector<32x64xf32>
    %22 = arith.mulf %21, %9 : vector<32x64xf32>
    %cst_11 = arith.constant 1.000000e+00 : f32
    %23 = vector.broadcast %cst_11 : f32 to vector<32x64xf32>
    %24 = arith.addf %23, %22 : vector<32x64xf32>
    %cst_12 = arith.constant 2.000000e+00 : f32
    %25 = vector.broadcast %cst_12 : f32 to vector<32x64xf32>
    %26 = arith.mulf %25, %10 : vector<32x64xf32>
    %27 = arith.addf %24, %26 : vector<32x64xf32>
    %cst_13 = arith.constant 2.000000e+00 : f32
    %28 = vector.broadcast %cst_13 : f32 to vector<32x64xf32>
    %29 = arith.mulf %28, %9 : vector<32x64xf32>
    %cst_14 = arith.constant 2.000000e+00 : f32
    %30 = vector.broadcast %cst_14 : f32 to vector<32x64xf32>
    %31 = arith.addf %30, %29 : vector<32x64xf32>
    %32 = arith.addf %31, %10 : vector<32x64xf32>
    %33 = arith.select %12, %27, %32 : vector<32x64xi1>, vector<32x64xf32>
    %34 = arith.divf %20, %33 : vector<32x64xf32>
    %35 = arith.mulf %5, %34 : vector<32x64xf32>
    %36 = tpu.iota {dimensions = array<i32: 0>} : vector<32x1xi32>
    %c16_i32 = arith.constant 16 : i32
    %c0_i32 = arith.constant 0 : i32
    %37 = arith.cmpi eq, %c16_i32, %c0_i32 : i32
    %c1_i32 = arith.constant 1 : i32
    %38 = arith.select %37, %c1_i32, %c16_i32 : i32
    %39 = vector.broadcast %38 : i32 to vector<32x1xi32>
    %40 = arith.remsi %36, %39 : vector<32x1xi32>
    %c0_i32_15 = arith.constant 0 : i32
    %41 = vector.broadcast %c0_i32_15 : i32 to vector<32x1xi32>
    %42 = arith.cmpi ne, %40, %41 : vector<32x1xi32>
    %c0_i32_16 = arith.constant 0 : i32
    %43 = vector.broadcast %c0_i32_16 : i32 to vector<32x1xi32>
    %44 = arith.cmpi slt, %40, %43 : vector<32x1xi32>
    %c0_i32_17 = arith.constant 0 : i32
    %45 = arith.cmpi slt, %38, %c0_i32_17 : i32
    %46 = vector.broadcast %45 : i1 to vector<32x1xi1>
    %47 = vector.broadcast %46 : vector<32x1xi1> to vector<32x1xi1>
    %48 = arith.xori %44, %47 : vector<32x1xi1>
    %49 = arith.andi %48, %42 : vector<32x1xi1>
    %50 = vector.broadcast %38 : i32 to vector<32x1xi32>
    %51 = arith.addi %40, %50 : vector<32x1xi32>
    %52 = arith.select %49, %51, %40 : vector<32x1xi1>, vector<32x1xi32>
    %cst_18 = arith.constant 0.000000e+00 : f32
    %53 = vector.broadcast %cst_18 : f32 to vector<32x64xf32>
    %c0_19 = arith.constant 0 : index
    %c0_20 = arith.constant 0 : index
    %54 = vector.load %arg5[%c0_19, %c0_20] : memref<1x64xf32, #tpu.memory_space<vmem>>, vector<1x64xf32>
    %55 = vector.broadcast %54 : vector<1x64xf32> to vector<32x64xf32>
    %56 = arith.addf %53, %55 : vector<32x64xf32>
    %c2_i32 = arith.constant 2 : i32
    %57 = tpu.dynamic_rotate %35 by %c2_i32 dim 0 : vector<32x64xf32>, i32 -> vector<32x64xf32>
    %c-2_i32 = arith.constant -2 : i32
    %58 = vector.broadcast %c-2_i32 : i32 to vector<32x1xi32>
    %59 = arith.addi %52, %58 : vector<32x1xi32>
    %c0_i32_21 = arith.constant 0 : i32
    %60 = vector.broadcast %c0_i32_21 : i32 to vector<32x1xi32>
    %61 = arith.cmpi sge, %59, %60 : vector<32x1xi32>
    %c-2_i32_22 = arith.constant -2 : i32
    %62 = vector.broadcast %c-2_i32_22 : i32 to vector<32x1xi32>
    %63 = arith.addi %52, %62 : vector<32x1xi32>
    %c16_i32_23 = arith.constant 16 : i32
    %64 = vector.broadcast %c16_i32_23 : i32 to vector<32x1xi32>
    %65 = arith.cmpi slt, %63, %64 : vector<32x1xi32>
    %66 = arith.andi %61, %65 : vector<32x1xi1>
    %cst_24 = arith.constant 0.000000e+00 : f32
    %67 = vector.shape_cast %66 : vector<32x1xi1> to vector<32x1xi1>
    %68 = vector.broadcast %67 : vector<32x1xi1> to vector<32x64xi1>
    %69 = vector.broadcast %cst_24 : f32 to vector<32x64xf32>
    %70 = arith.select %68, %57, %69 : vector<32x64xi1>, vector<32x64xf32>
    %c0_25 = arith.constant 0 : index
    %c0_26 = arith.constant 0 : index
    %c0_27 = arith.constant 0 : index
    %71 = vector.load %arg4[%c0_25, %c0_26, %c0_27] : memref<5x64x64xf32, #tpu.memory_space<vmem>>, vector<1x64x64xf32>
    %72 = vector.shape_cast %71 : vector<1x64x64xf32> to vector<64x64xf32>
    %cst_28 = arith.constant dense<0.000000e+00> : vector<32x64xf32>
    %73 = tpu.matmul %70, %72, %cst_28 {dimension_numbers = #tpu.dot_dimension_numbers<[1], [0], [0], [1], [0, 0, 1, 1], [], []>} : vector<32x64xf32>, vector<64x64xf32>, vector<32x64xf32> -> vector<32x64xf32>
    %74 = arith.addf %56, %73 : vector<32x64xf32>
    %c1_i32_29 = arith.constant 1 : i32
    %75 = tpu.dynamic_rotate %35 by %c1_i32_29 dim 0 : vector<32x64xf32>, i32 -> vector<32x64xf32>
    %c-1_i32 = arith.constant -1 : i32
    %76 = vector.broadcast %c-1_i32 : i32 to vector<32x1xi32>
    %77 = arith.addi %52, %76 : vector<32x1xi32>
    %c0_i32_30 = arith.constant 0 : i32
    %78 = vector.broadcast %c0_i32_30 : i32 to vector<32x1xi32>
    %79 = arith.cmpi sge, %77, %78 : vector<32x1xi32>
    %c-1_i32_31 = arith.constant -1 : i32
    %80 = vector.broadcast %c-1_i32_31 : i32 to vector<32x1xi32>
    %81 = arith.addi %52, %80 : vector<32x1xi32>
    %c16_i32_32 = arith.constant 16 : i32
    %82 = vector.broadcast %c16_i32_32 : i32 to vector<32x1xi32>
    %83 = arith.cmpi slt, %81, %82 : vector<32x1xi32>
    %84 = arith.andi %79, %83 : vector<32x1xi1>
    %cst_33 = arith.constant 0.000000e+00 : f32
    %85 = vector.shape_cast %84 : vector<32x1xi1> to vector<32x1xi1>
    %86 = vector.broadcast %85 : vector<32x1xi1> to vector<32x64xi1>
    %87 = vector.broadcast %cst_33 : f32 to vector<32x64xf32>
    %88 = arith.select %86, %75, %87 : vector<32x64xi1>, vector<32x64xf32>
    %c1 = arith.constant 1 : index
    %c0_34 = arith.constant 0 : index
    %c0_35 = arith.constant 0 : index
    %89 = vector.load %arg4[%c1, %c0_34, %c0_35] : memref<5x64x64xf32, #tpu.memory_space<vmem>>, vector<1x64x64xf32>
    %90 = vector.shape_cast %89 : vector<1x64x64xf32> to vector<64x64xf32>
    %cst_36 = arith.constant dense<0.000000e+00> : vector<32x64xf32>
    %91 = tpu.matmul %88, %90, %cst_36 {dimension_numbers = #tpu.dot_dimension_numbers<[1], [0], [0], [1], [0, 0, 1, 1], [], []>} : vector<32x64xf32>, vector<64x64xf32>, vector<32x64xf32> -> vector<32x64xf32>
    %92 = arith.addf %74, %91 : vector<32x64xf32>
    %c2 = arith.constant 2 : index
    %c0_37 = arith.constant 0 : index
    %c0_38 = arith.constant 0 : index
    %93 = vector.load %arg4[%c2, %c0_37, %c0_38] : memref<5x64x64xf32, #tpu.memory_space<vmem>>, vector<1x64x64xf32>
    %94 = vector.shape_cast %93 : vector<1x64x64xf32> to vector<64x64xf32>
    %cst_39 = arith.constant dense<0.000000e+00> : vector<32x64xf32>
    %95 = tpu.matmul %35, %94, %cst_39 {dimension_numbers = #tpu.dot_dimension_numbers<[1], [0], [0], [1], [0, 0, 1, 1], [], []>} : vector<32x64xf32>, vector<64x64xf32>, vector<32x64xf32> -> vector<32x64xf32>
    %96 = arith.addf %92, %95 : vector<32x64xf32>
    %c31_i32 = arith.constant 31 : i32
    %97 = tpu.dynamic_rotate %35 by %c31_i32 dim 0 : vector<32x64xf32>, i32 -> vector<32x64xf32>
    %c1_i32_40 = arith.constant 1 : i32
    %98 = vector.broadcast %c1_i32_40 : i32 to vector<32x1xi32>
    %99 = arith.addi %52, %98 : vector<32x1xi32>
    %c0_i32_41 = arith.constant 0 : i32
    %100 = vector.broadcast %c0_i32_41 : i32 to vector<32x1xi32>
    %101 = arith.cmpi sge, %99, %100 : vector<32x1xi32>
    %c1_i32_42 = arith.constant 1 : i32
    %102 = vector.broadcast %c1_i32_42 : i32 to vector<32x1xi32>
    %103 = arith.addi %52, %102 : vector<32x1xi32>
    %c16_i32_43 = arith.constant 16 : i32
    %104 = vector.broadcast %c16_i32_43 : i32 to vector<32x1xi32>
    %105 = arith.cmpi slt, %103, %104 : vector<32x1xi32>
    %106 = arith.andi %101, %105 : vector<32x1xi1>
    %cst_44 = arith.constant 0.000000e+00 : f32
    %107 = vector.shape_cast %106 : vector<32x1xi1> to vector<32x1xi1>
    %108 = vector.broadcast %107 : vector<32x1xi1> to vector<32x64xi1>
    %109 = vector.broadcast %cst_44 : f32 to vector<32x64xf32>
    %110 = arith.select %108, %97, %109 : vector<32x64xi1>, vector<32x64xf32>
    %c3 = arith.constant 3 : index
    %c0_45 = arith.constant 0 : index
    %c0_46 = arith.constant 0 : index
    %111 = vector.load %arg4[%c3, %c0_45, %c0_46] : memref<5x64x64xf32, #tpu.memory_space<vmem>>, vector<1x64x64xf32>
    %112 = vector.shape_cast %111 : vector<1x64x64xf32> to vector<64x64xf32>
    %cst_47 = arith.constant dense<0.000000e+00> : vector<32x64xf32>
    %113 = tpu.matmul %110, %112, %cst_47 {dimension_numbers = #tpu.dot_dimension_numbers<[1], [0], [0], [1], [0, 0, 1, 1], [], []>} : vector<32x64xf32>, vector<64x64xf32>, vector<32x64xf32> -> vector<32x64xf32>
    %114 = arith.addf %96, %113 : vector<32x64xf32>
    %c30_i32 = arith.constant 30 : i32
    %115 = tpu.dynamic_rotate %35 by %c30_i32 dim 0 : vector<32x64xf32>, i32 -> vector<32x64xf32>
    %c2_i32_48 = arith.constant 2 : i32
    %116 = vector.broadcast %c2_i32_48 : i32 to vector<32x1xi32>
    %117 = arith.addi %52, %116 : vector<32x1xi32>
    %c0_i32_49 = arith.constant 0 : i32
    %118 = vector.broadcast %c0_i32_49 : i32 to vector<32x1xi32>
    %119 = arith.cmpi sge, %117, %118 : vector<32x1xi32>
    %c2_i32_50 = arith.constant 2 : i32
    %120 = vector.broadcast %c2_i32_50 : i32 to vector<32x1xi32>
    %121 = arith.addi %52, %120 : vector<32x1xi32>
    %c16_i32_51 = arith.constant 16 : i32
    %122 = vector.broadcast %c16_i32_51 : i32 to vector<32x1xi32>
    %123 = arith.cmpi slt, %121, %122 : vector<32x1xi32>
    %124 = arith.andi %119, %123 : vector<32x1xi1>
    %cst_52 = arith.constant 0.000000e+00 : f32
    %125 = vector.shape_cast %124 : vector<32x1xi1> to vector<32x1xi1>
    %126 = vector.broadcast %125 : vector<32x1xi1> to vector<32x64xi1>
    %127 = vector.broadcast %cst_52 : f32 to vector<32x64xf32>
    %128 = arith.select %126, %115, %127 : vector<32x64xi1>, vector<32x64xf32>
    %c4 = arith.constant 4 : index
    %c0_53 = arith.constant 0 : index
    %c0_54 = arith.constant 0 : index
    %129 = vector.load %arg4[%c4, %c0_53, %c0_54] : memref<5x64x64xf32, #tpu.memory_space<vmem>>, vector<1x64x64xf32>
    %130 = vector.shape_cast %129 : vector<1x64x64xf32> to vector<64x64xf32>
    %cst_55 = arith.constant dense<0.000000e+00> : vector<32x64xf32>
    %131 = tpu.matmul %128, %130, %cst_55 {dimension_numbers = #tpu.dot_dimension_numbers<[1], [0], [0], [1], [0, 0, 1, 1], [], []>} : vector<32x64xf32>, vector<64x64xf32>, vector<32x64xf32> -> vector<32x64xf32>
    %132 = arith.addf %114, %131 : vector<32x64xf32>
    %133 = math.absf %132 : vector<32x64xf32>
    %cst_56 = arith.constant 0.000000e+00 : f32
    %134 = vector.broadcast %cst_56 : f32 to vector<32x64xf32>
    %135 = arith.subf %134, %133 : vector<32x64xf32>
    %136 = math.exp %135 : vector<32x64xf32>
    %137 = arith.mulf %136, %136 : vector<32x64xf32>
    %cst_57 = arith.constant 0.000000e+00 : f32
    %138 = vector.broadcast %cst_57 : f32 to vector<32x64xf32>
    %139 = arith.cmpf oge, %132, %138 : vector<32x64xf32>
    %cst_58 = arith.constant 2.000000e+00 : f32
    %140 = vector.broadcast %cst_58 : f32 to vector<32x64xf32>
    %141 = arith.mulf %140, %136 : vector<32x64xf32>
    %cst_59 = arith.constant 1.000000e+00 : f32
    %142 = vector.broadcast %cst_59 : f32 to vector<32x64xf32>
    %143 = arith.addf %142, %141 : vector<32x64xf32>
    %cst_60 = arith.constant 2.000000e+00 : f32
    %144 = vector.broadcast %cst_60 : f32 to vector<32x64xf32>
    %145 = arith.mulf %144, %136 : vector<32x64xf32>
    %146 = arith.addf %145, %137 : vector<32x64xf32>
    %147 = arith.select %139, %143, %146 : vector<32x64xi1>, vector<32x64xf32>
    %cst_61 = arith.constant 2.000000e+00 : f32
    %148 = vector.broadcast %cst_61 : f32 to vector<32x64xf32>
    %149 = arith.mulf %148, %136 : vector<32x64xf32>
    %cst_62 = arith.constant 1.000000e+00 : f32
    %150 = vector.broadcast %cst_62 : f32 to vector<32x64xf32>
    %151 = arith.addf %150, %149 : vector<32x64xf32>
    %cst_63 = arith.constant 2.000000e+00 : f32
    %152 = vector.broadcast %cst_63 : f32 to vector<32x64xf32>
    %153 = arith.mulf %152, %137 : vector<32x64xf32>
    %154 = arith.addf %151, %153 : vector<32x64xf32>
    %cst_64 = arith.constant 2.000000e+00 : f32
    %155 = vector.broadcast %cst_64 : f32 to vector<32x64xf32>
    %156 = arith.mulf %155, %136 : vector<32x64xf32>
    %cst_65 = arith.constant 2.000000e+00 : f32
    %157 = vector.broadcast %cst_65 : f32 to vector<32x64xf32>
    %158 = arith.addf %157, %156 : vector<32x64xf32>
    %159 = arith.addf %158, %137 : vector<32x64xf32>
    %160 = arith.select %139, %154, %159 : vector<32x64xi1>, vector<32x64xf32>
    %161 = arith.divf %147, %160 : vector<32x64xf32>
    %162 = arith.mulf %132, %161 : vector<32x64xf32>
    %163 = tpu.concatenate %35, %162 in 1 : vector<32x64xf32>, vector<32x64xf32> -> vector<32x128xf32>
    %c0_66 = arith.constant 0 : index
    %c0_67 = arith.constant 0 : index
    %164 = vector.load %arg6[%c0_66, %c0_67] : memref<128x128xf32, #tpu.memory_space<vmem>>, vector<128x128xf32>
    %cst_68 = arith.constant dense<0.000000e+00> : vector<32x128xf32>
    %165 = tpu.matmul %163, %164, %cst_68 {dimension_numbers = #tpu.dot_dimension_numbers<[1], [0], [0], [1], [0, 0, 1, 1], [], []>} : vector<32x128xf32>, vector<128x128xf32>, vector<32x128xf32> -> vector<32x128xf32>
    %c0_69 = arith.constant 0 : index
    %c0_70 = arith.constant 0 : index
    %166 = vector.load %arg7[%c0_69, %c0_70] : memref<32x128xf32, #tpu.memory_space<vmem>>, vector<32x128xf32>
    tpu.vector_store %arg7[%c0_69, %c0_70], %165 {strides = array<i32>} : memref<32x128xf32, #tpu.memory_space<vmem>>, vector<32x128xf32>,
    return
  }
  func.func @transform_0(%arg0: i32) -> (i32, i32) {
    %c0_i32 = arith.constant 0 : i32
    %c0_i32_0 = arith.constant 0 : i32
    return %arg0, %c0_i32 : i32, i32
  }
  func.func @transform_1(%arg0: i32) -> (i32, i32) {
    %c0_i32 = arith.constant 0 : i32
    %c0_i32_0 = arith.constant 0 : i32
    %c0_i32_1 = arith.constant 0 : i32
    return %c0_i32, %c0_i32_0 : i32, i32
  }
  func.func @transform_2(%arg0: i32) -> (i32, i32) {
    %c0_i32 = arith.constant 0 : i32
    %c0_i32_0 = arith.constant 0 : i32
    %c0_i32_1 = arith.constant 0 : i32
    return %c0_i32, %c0_i32_0 : i32, i32
  }
  func.func @transform_3(%arg0: i32) -> (i32, i32, i32) {
    %c0_i32 = arith.constant 0 : i32
    %c0_i32_0 = arith.constant 0 : i32
    %c0_i32_1 = arith.constant 0 : i32
    %c0_i32_2 = arith.constant 0 : i32
    return %c0_i32, %c0_i32_0, %c0_i32_1 : i32, i32, i32
  }
  func.func @transform_4(%arg0: i32) -> (i32, i32) {
    %c0_i32 = arith.constant 0 : i32
    %c0_i32_0 = arith.constant 0 : i32
    %c0_i32_1 = arith.constant 0 : i32
    return %c0_i32, %c0_i32_0 : i32, i32
  }
  func.func @transform_5(%arg0: i32) -> (i32, i32) {
    %c0_i32 = arith.constant 0 : i32
    %c0_i32_0 = arith.constant 0 : i32
    %c0_i32_1 = arith.constant 0 : i32
    return %c0_i32, %c0_i32_0 : i32, i32
  }
  func.func @transform_6(%arg0: i32) -> (i32, i32) {
    %c0_i32 = arith.constant 0 : i32
    %c0_i32_0 = arith.constant 0 : i32
    return %arg0, %c0_i32 : i32, i32
  }
}

</mosaic_0001>

<llo_original>
// kernel: tpu_custom_call.1
$region0: #{tpu_custom_call.1}
  #allocation0 [shape = 'u32[]', space=smem, size = 0x4, offset = 0x4, fixed_abs, tag = 'smem constant byte address 0x4 - core index']
  #allocation1 [shape = 'u32[72,128]{1,0:T(1,128)}', space=vmem, size = 0x9000, scoped, tag = 'internal scratch']
  %s0 = inlined_call_operand.vmem [shape: f32[32,128], index: 0, kind: input, shape index: {}]
  %s1 = inlined_call_operand.vmem [shape: f32[128,64], index: 1, kind: input, shape index: {}]
  %s2 = inlined_call_operand.vmem [shape: f32[1,64], index: 2, kind: input, shape index: {}]
  %s3 = inlined_call_operand.hbm [shape: f32[5,64,64], index: 3, kind: input, shape index: {}]
  %s4 = inlined_call_operand.vmem [shape: f32[1,64], index: 4, kind: input, shape index: {}]
  %s5 = inlined_call_operand.vmem [shape: f32[128,128], index: 5, kind: input, shape index: {}]
  %s6 = inlined_call_operand.hbm [shape: f32[32,128], index: 6, kind: output, shape index: {}]
  %s7 = sld [smem:[#allocation0]]
  $region38: #{tpu_custom_call.1} parent=0
    _
  %s9 = ssub.s32 1, %s7
  %s10 = scalar_select 0, %s9, %s7
  $region1: #{tpu_custom_call.1} parent=0
    #allocation2 [shape = 'u8[163840]{0}', space=vmem, size = 0x28000, scoped, tag = 'input window, operand 3, single buffered']
    #allocation3 [shape = 's32[1]{0}', space=sflag, size = 0x4, scoped, tag = 'scoped memory for tpu_custom_call.1']
    #allocation4 [shape = 's32[1]{0}', space=sflag, size = 0x4, scoped, tag = 'scoped memory for tpu_custom_call.1']
    #allocation5 [shape = 'u8[16384]{0}', space=vmem, size = 0x4000, scoped, tag = 'output window, operand 0, single buffered']
    %11 = vsyncpa [#allocation3], 0
    %12 = vsyncpa [#allocation4], 0
    // Predicated region
    $region2: #{tpu_custom_call.1} parent=1 // pred_check
      _
    $region3: #{tpu_custom_call.1} parent=1 // pred_check_branch
      %14 = sbr.rel (0) target = $region5
    $region4: #{tpu_custom_call.1} parent=1 // pred_region
      _
    $region5: #{tpu_custom_call.1} parent=1 // pred_fallthru
      _
    // Predicated region
    $region6: #{tpu_custom_call.1} parent=1 // pred_check
      _
    $region7: #{tpu_custom_call.1} parent=1 // pred_check_branch
      %16 = sbr.rel (0) target = $region9
    $region8: #{tpu_custom_call.1} parent=1 // pred_region
      _
    $region9: #{tpu_custom_call.1} parent=1 // pred_fallthru
      _
    // Predicated region
    $region10: #{tpu_custom_call.1} parent=1 // pred_check
      _
    $region11: #{tpu_custom_call.1} parent=1 // pred_check_branch
      %18 = sbr.rel (0) target = $region13
    $region12: #{tpu_custom_call.1} parent=1 // pred_region
      _
    $region13: #{tpu_custom_call.1} parent=1 // pred_fallthru
      _
    // Predicated region
    $region14: #{tpu_custom_call.1} parent=1 // pred_check
      _
    $region15: #{tpu_custom_call.1} parent=1 // pred_check_branch
      %20 = sbr.rel (0) target = $region17
    $region16: #{tpu_custom_call.1} parent=1 // pred_region
      %22 = vsyncadd [#allocation3], 0
      %s23 = sshll.u32 %s3, 4
      %s24 = int_to_ptr.hbm [resolvable:$true] %s23
      %s25 = sshll.u32 [#allocation2], 4
      %s26 = int_to_ptr.vmem [resolvable:$true] %s25
      %31 = dma.hbm_to_vmem [thread:$0]  %s24, 5120, %s26, [#allocation3], 128, 128, 8
    $region17: #{tpu_custom_call.1} parent=1 // pred_fallthru
      _
    // Predicated region
    $region18: #{tpu_custom_call.1} parent=1 // pred_check
      _
    $region19: #{tpu_custom_call.1} parent=1 // pred_check_branch
      %33 = sbr.rel (0) target = $region21
    $region20: #{tpu_custom_call.1} parent=1 // pred_region
      _
    $region21: #{tpu_custom_call.1} parent=1 // pred_fallthru
      _
    // Predicated region
    $region22: #{tpu_custom_call.1} parent=1 // pred_check
      _
    $region23: #{tpu_custom_call.1} parent=1 // pred_check_branch
      %35 = sbr.rel (0) target = $region25
    $region24: #{tpu_custom_call.1} parent=1 // pred_region
      _
    $region25: #{tpu_custom_call.1} parent=1 // pred_fallthru
      _
    // Predicated region
    $region26: #{tpu_custom_call.1} parent=1 // pred_check
      _
    $region27: #{tpu_custom_call.1} parent=1 // pred_check_branch
      %37 = sbr.rel (0) target = $region29
    $region28: #{tpu_custom_call.1} parent=1 // pred_region
      %39 = dma.done [#allocation3], 5120
    $region29: #{tpu_custom_call.1} parent=1 // pred_fallthru
      _
    %v40 = vld [vmem:[%s0] sm:$0xff]
    %v41 = vld [vmem:[%s0 + $0x8] sm:$0xff]
    %v42 = vld [vmem:[%s0 + $0x10] sm:$0xff]
    %v43 = vld [vmem:[%s0 + $0x18] sm:$0xff]
    %v44 = vld [vmem:[%s1] sm:$0xff]
    %v45 = vld [vmem:[%s1 + $0x8] sm:$0xff]
    %v46 = vld [vmem:[%s1 + $0x10] sm:$0xff]
    %v47 = vld [vmem:[%s1 + $0x18] sm:$0xff]
    %v48 = vld [vmem:[%s1 + $0x20] sm:$0xff]
    %v49 = vld [vmem:[%s1 + $0x28] sm:$0xff]
    %v50 = vld [vmem:[%s1 + $0x30] sm:$0xff]
    %v51 = vld [vmem:[%s1 + $0x38] sm:$0xff]
    %v52 = vld [vmem:[%s1 + $0x40] sm:$0xff]
    %v53 = vld [vmem:[%s1 + $0x48] sm:$0xff]
    %v54 = vld [vmem:[%s1 + $0x50] sm:$0xff]
    %v55 = vld [vmem:[%s1 + $0x58] sm:$0xff]
    %v56 = vld [vmem:[%s1 + $0x60] sm:$0xff]
    %v57 = vld [vmem:[%s1 + $0x68] sm:$0xff]
    %v58 = vld [vmem:[%s1 + $0x70] sm:$0xff]
    %v59 = vld [vmem:[%s1 + $0x78] sm:$0xff]
    %v60 = vld [vmem:[%s2] sm:$0x1]
    %v62 = vperm.slane %v60, 0
    %64 = vmatpush.msra.mxu0 %v59
    %65 = vmatpush.msra.mxu0 %v58
    %66 = vmatpush.msra.mxu0 %v57
    %67 = vmatpush.msra.mxu0 %v56
    %68 = vmatpush.msra.mxu0 %v55
    %69 = vmatpush.msra.mxu0 %v54
    %70 = vmatpush.msra.mxu0 %v53
    %71 = vmatpush.msra.mxu0 %v52
    %72 = vmatpush.msra.mxu0 %v51
    %73 = vmatpush.msra.mxu0 %v50
    %74 = vmatpush.msra.mxu0 %v49
    %75 = vmatpush.msra.mxu0 %v48
    %76 = vmatpush.msra.mxu0 %v47
    %77 = vmatpush.msra.mxu0 %v46
    %78 = vmatpush.msra.mxu0 %v45
    %79 = vmatpush.msra.mxu0 %v44
    %80 = vmatmul.f32.gmra.mxu0 %v40
    %v81 = vpop.f32.mrf.mxu0
    %v82 = vadd.f32 %v62, %v81
    %83 = vmatmul.f32.gmra.mxu0 %v41
    %v84 = vpop.f32.mrf.mxu0
    %v85 = vadd.f32 %v62, %v84
    %86 = vmatmul.f32.gmra.mxu0 %v42
    %v87 = vpop.f32.mrf.mxu0
    %v88 = vadd.f32 %v62, %v87
    %89 = vmatmul.f32.gmra.mxu0 %v43
    %v90 = vpop.f32.mrf.mxu0
    %v91 = vadd.f32 %v62, %v90
    %92 = vdwg.mxu0
    %v93 = vand.u32 2147483647, %v82
    %v94 = vand.u32 2147483647, %v85
    %v95 = vand.u32 2147483647, %v88
    %v96 = vand.u32 2147483647, %v91
    %v97 = vsub.f32 0.0, %v93
    %v98 = vsub.f32 0.0, %v94
    %v99 = vsub.f32 0.0, %v95
    %v100 = vsub.f32 0.0, %v96
    %v101 = vmul.f32 %v97, 1.442695
    %v102 = vpow.pop %v101
    %v103 = vmul.f32 %v98, 1.442695
    %v104 = vpow.pop %v103
    %v105 = vmul.f32 %v99, 1.442695
    %v106 = vpow.pop %v105
    %v107 = vmul.f32 %v100, 1.442695
    %v108 = vpow.pop %v107
    %v109 = vmul.f32 %v102, %v102
    %v110 = vmul.f32 %v104, %v104
    %v111 = vmul.f32 %v106, %v106
    %v112 = vmul.f32 %v108, %v108
    %vm113 = vcmp.ge.f32.partialorder %v82, 0.0
    %vm114 = vcmp.ge.f32.partialorder %v85, 0.0
    %vm115 = vcmp.ge.f32.partialorder %v88, 0.0
    %vm116 = vcmp.ge.f32.partialorder %v91, 0.0
    %v117 = vmul.f32 %v102, 2.0
    %v118 = vmul.f32 %v104, 2.0
    %v119 = vmul.f32 %v106, 2.0
    %v120 = vmul.f32 %v108, 2.0
    %v121 = vadd.f32 %v117, 1.0
    %v122 = vadd.f32 %v118, 1.0
    %v123 = vadd.f32 %v119, 1.0
    %v124 = vadd.f32 %v120, 1.0
    %v125 = vadd.f32 %v117, %v109
    %v126 = vadd.f32 %v118, %v110
    %v127 = vadd.f32 %v119, %v111
    %v128 = vadd.f32 %v120, %v112
    %v129 = vsel %vm113, %v121, %v125
    %v130 = vsel %vm114, %v122, %v126
    %v131 = vsel %vm115, %v123, %v127
    %v132 = vsel %vm116, %v124, %v128
    %v133 = vmul.f32 %v109, 2.0
    %v134 = vmul.f32 %v110, 2.0
    %v135 = vmul.f32 %v111, 2.0
    %v136 = vmul.f32 %v112, 2.0
    %v137 = vadd.f32 %v121, %v133
    %v138 = vadd.f32 %v122, %v134
    %v139 = vadd.f32 %v123, %v135
    %v140 = vadd.f32 %v124, %v136
    %v141 = vadd.f32 %v117, 2.0
    %v142 = vadd.f32 %v118, 2.0
    %v143 = vadd.f32 %v119, 2.0
    %v144 = vadd.f32 %v120, 2.0
    %v145 = vadd.f32 %v141, %v109
    %v146 = vadd.f32 %v142, %v110
    %v147 = vadd.f32 %v143, %v111
    %v148 = vadd.f32 %v144, %v112
    %v149 = vsel %vm113, %v137, %v145
    %v150 = vsel %vm114, %v138, %v146
    %v151 = vsel %vm115, %v139, %v147
    %v152 = vsel %vm116, %v140, %v148
    %v153 = vrcp.pop %v149
    %v154 = vmul.f32 %v149, %v153
    %v155 = vsub.f32 1.0, %v154
    %v156 = vmul.f32 %v153, %v155
    %v157 = vadd.f32 %v153, %v156
    %vm158 = vweird.f32 %v149
    %vm159 = vweird.f32 %v153
    %vm160 = vmor %vm158, %vm159
    %v161 = vsel %vm160, %v153, %v157
    %v162 = vand.u32 2147483647, %v149
    %vm163 = vcmp.eq.f32.partialorder %v162, 8.507059e+37
    %v164 = vand.u32 %v149, 2147483648
    %v165 = vor.u32 1.1754944e-38, %v164
    %v166 = vsel %vm163, %v165, %v161
    %v167 = vmul.f32 %v129, %v166
    %v168 = vrcp.pop %v150
    %v169 = vmul.f32 %v150, %v168
    %v170 = vsub.f32 1.0, %v169
    %v171 = vmul.f32 %v168, %v170
    %v172 = vadd.f32 %v168, %v171
    %vm173 = vweird.f32 %v150
    %vm174 = vweird.f32 %v168
    %vm175 = vmor %vm173, %vm174
    %v176 = vsel %vm175, %v168, %v172
    %v177 = vand.u32 2147483647, %v150
    %vm178 = vcmp.eq.f32.partialorder %v177, 8.507059e+37
    %v179 = vand.u32 %v150, 2147483648
    %v180 = vor.u32 1.1754944e-38, %v179
    %v181 = vsel %vm178, %v180, %v176
    %v182 = vmul.f32 %v130, %v181
    %v183 = vrcp.pop %v151
    %v184 = vmul.f32 %v151, %v183
    %v185 = vsub.f32 1.0, %v184
    %v186 = vmul.f32 %v183, %v185
    %v187 = vadd.f32 %v183, %v186
    %vm188 = vweird.f32 %v151
    %vm189 = vweird.f32 %v183
    %vm190 = vmor %vm188, %vm189
    %v191 = vsel %vm190, %v183, %v187
    %v192 = vand.u32 2147483647, %v151
    %vm193 = vcmp.eq.f32.partialorder %v192, 8.507059e+37
    %v194 = vand.u32 %v151, 2147483648
    %v195 = vor.u32 1.1754944e-38, %v194
    %v196 = vsel %vm193, %v195, %v191
    %v197 = vmul.f32 %v131, %v196
    %v198 = vrcp.pop %v152
    %v199 = vmul.f32 %v152, %v198
    %v200 = vsub.f32 1.0, %v199
    %v201 = vmul.f32 %v198, %v200
    %v202 = vadd.f32 %v198, %v201
    %vm203 = vweird.f32 %v152
    %vm204 = vweird.f32 %v198
    %vm205 = vmor %vm203, %vm204
    %v206 = vsel %vm205, %v198, %v202
    %v207 = vand.u32 2147483647, %v152
    %vm208 = vcmp.eq.f32.partialorder %v207, 8.507059e+37
    %v209 = vand.u32 %v152, 2147483648
    %v210 = vor.u32 1.1754944e-38, %v209
    %v211 = vsel %vm208, %v210, %v206
    %v212 = vmul.f32 %v132, %v211
    %v213 = vmul.f32 %v82, %v167
    %v214 = vmul.f32 %v85, %v182
    %v215 = vmul.f32 %v88, %v197
    %v216 = vmul.f32 %v91, %v212
    %v217 = vlaneseq
    %v218 = vshrl.u32 %v217, 7
    %v219 = vadd.s32 %v218, 8
    %v220 = vadd.s32 %v218, 16
    %v221 = vadd.s32 %v218, 24
    %vm222 = vcmp.lt.s32.totalorder %v218, 0
    %v223 = vsub.s32 0, %v218
    %v224 = vsel %vm222, %v223, %v218
    %v225 = vshrl.u32 %v224, 4
    %v226 = vand.u32 %v224, 15
    %v227 = vsub.s32 0, %v226
    %v228 = vsel %vm222, %v227, %v226
    %vm229 = vcmp.lt.s32.totalorder %v219, 0
    %v230 = vsub.s32 0, %v219
    %v231 = vsel %vm229, %v230, %v219
    %v232 = vshrl.u32 %v231, 4
    %v233 = vand.u32 %v231, 15
    %v234 = vsub.s32 0, %v233
    %v235 = vsel %vm229, %v234, %v233
    %vm236 = vcmp.lt.s32.totalorder %v220, 0
    %v237 = vsub.s32 0, %v220
    %v238 = vsel %vm236, %v237, %v220
    %v239 = vshrl.u32 %v238, 4
    %v240 = vand.u32 %v238, 15
    %v241 = vsub.s32 0, %v240
    %v242 = vsel %vm236, %v241, %v240
    %vm243 = vcmp.lt.s32.totalorder %v221, 0
    %v244 = vsub.s32 0, %v221
    %v245 = vsel %vm243, %v244, %v221
    %v246 = vshrl.u32 %v245, 4
    %v247 = vand.u32 %v245, 15
    %v248 = vsub.s32 0, %v247
    %v249 = vsel %vm243, %v248, %v247
    %vm250 = vcmp.ne.s32.totalorder %v228, 0
    %vm251 = vcmp.ne.s32.totalorder %v235, 0
    %vm252 = vcmp.ne.s32.totalorder %v242, 0
    %vm253 = vcmp.ne.s32.totalorder %v249, 0
    %vm254 = vcmp.lt.s32.totalorder %v228, 0
    %vm255 = vcmp.lt.s32.totalorder %v235, 0
    %vm256 = vcmp.lt.s32.totalorder %v242, 0
    %vm257 = vcmp.lt.s32.totalorder %v249, 0
    %vm258 = vmand %vm254, %vm250
    %vm259 = vmand %vm255, %vm251
    %vm260 = vmand %vm256, %vm252
    %vm261 = vmand %vm257, %vm253
    %v262 = vadd.s32 %v228, 16
    %v263 = vadd.s32 %v235, 16
    %v264 = vadd.s32 %v242, 16
    %v265 = vadd.s32 %v249, 16
    %v266 = vsel %vm258, %v262, %v228
    %v267 = vsel %vm259, %v263, %v235
    %v268 = vsel %vm260, %v264, %v242
    %v269 = vsel %vm261, %v265, %v249
    %v270 = vld [vmem:[%s4] sm:$0x1]
    %v272 = vperm.slane %v270, 0
    %v274 = vadd.f32 %v272, 0.0
    %v275 = vrot.slane %v213, 6
    %v276 = vrot.slane %v214, 6
    %v277 = vrot.slane %v215, 6
    %v278 = vrot.slane %v216, 6
    %vm279 = vcmp.lt.s32.totalorder %v218, 2
    %v280 = vsel %vm279, %v277, %v278
    %v281 = vsel %vm279, %v276, %v277
    %v282 = vsel %vm279, %v275, %v276
    %v283 = vsel %vm279, %v278, %v275
    %v284 = vadd.s32 %v266, 4294967294
    %v285 = vadd.s32 %v267, 4294967294
    %v286 = vadd.s32 %v268, 4294967294
    %v287 = vadd.s32 %v269, 4294967294
    %vm288 = vcmp.ge.s32.totalorder %v284, 0
    %vm289 = vcmp.ge.s32.totalorder %v285, 0
    %vm290 = vcmp.ge.s32.totalorder %v286, 0
    %vm291 = vcmp.ge.s32.totalorder %v287, 0
    %vm292 = vcmp.lt.s32.totalorder %v284, 16
    %vm293 = vcmp.lt.s32.totalorder %v285, 16
    %vm294 = vcmp.lt.s32.totalorder %v286, 16
    %vm295 = vcmp.lt.s32.totalorder %v287, 16
    %vm296 = vmand %vm288, %vm292
    %vm297 = vmand %vm289, %vm293
    %vm298 = vmand %vm290, %vm294
    %vm299 = vmand %vm291, %vm295
    %v300 = vsel %vm296, 1, 0
    %v301 = vsel %vm297, 1, 0
    %v302 = vsel %vm298, 1, 0
    %v303 = vsel %vm299, 1, 0
    %vm304 = vcmp.eq.s32.totalorder %v300, 1
    %vm305 = vcmp.eq.s32.totalorder %v301, 1
    %vm306 = vcmp.eq.s32.totalorder %v302, 1
    %vm307 = vcmp.eq.s32.totalorder %v303, 1
    %v308 = vsel %vm304, %v283, 0.0
    %v309 = vsel %vm305, %v282, 0.0
    %v310 = vsel %vm306, %v281, 0.0
    %v311 = vsel %vm307, %v280, 0.0
    %v312 = vld [vmem:[#allocation2] sm:$0xff]
    %v313 = vld [vmem:[#allocation2 + $0x8] sm:$0xff]
    %v314 = vld [vmem:[#allocation2 + $0x10] sm:$0xff]
    %v315 = vld [vmem:[#allocation2 + $0x18] sm:$0xff]
    %v316 = vld [vmem:[#allocation2 + $0x20] sm:$0xff]
    %v317 = vld [vmem:[#allocation2 + $0x28] sm:$0xff]
    %v318 = vld [vmem:[#allocation2 + $0x30] sm:$0xff]
    %v319 = vld [vmem:[#allocation2 + $0x38] sm:$0xff]
    %vm320 = vcmask 523264
    %v322 = vsel %vm320, %v308, 0
    %v325 = vsel %vm320, %v309, 0
    %v328 = vsel %vm320, %v310, 0
    %v331 = vsel %vm320, %v311, 0
    %333 = vmatpush.msra.mxu0 0.0
    %334 = vmatpush.msra.mxu0 0.0
    %335 = vmatpush.msra.mxu0 0.0
    %336 = vmatpush.msra.mxu0 0.0
    %337 = vmatpush.msra.mxu0 0.0
    %338 = vmatpush.msra.mxu0 0.0
    %339 = vmatpush.msra.mxu0 0.0
    %340 = vmatpush.msra.mxu0 0.0
    %341 = vmatpush.msra.mxu0 %v319
    %342 = vmatpush.msra.mxu0 %v318
    %343 = vmatpush.msra.mxu0 %v317
    %344 = vmatpush.msra.mxu0 %v316
    %345 = vmatpush.msra.mxu0 %v315
    %346 = vmatpush.msra.mxu0 %v314
    %347 = vmatpush.msra.mxu0 %v313
    %348 = vmatpush.msra.mxu0 %v312
    %349 = vmatmul.f32.gmra.mxu0 %v322
    %v350 = vpop.f32.mrf.mxu0
    %v351 = vadd.f32 0.0, %v350
    %352 = vmatmul.f32.gmra.mxu0 %v325
    %v353 = vpop.f32.mrf.mxu0
    %v354 = vadd.f32 0.0, %v353
    %355 = vmatmul.f32.gmra.mxu0 %v328
    %v356 = vpop.f32.mrf.mxu0
    %v357 = vadd.f32 0.0, %v356
    %358 = vmatmul.f32.gmra.mxu0 %v331
    %v359 = vpop.f32.mrf.mxu0
    %v360 = vadd.f32 0.0, %v359
    %361 = vdwg.mxu0
    %v362 = vadd.f32 %v274, %v351
    %v363 = vadd.f32 %v274, %v354
    %v364 = vadd.f32 %v274, %v357
    %v365 = vadd.f32 %v274, %v360
    %v366 = vrot.slane %v213, 7
    %v367 = vrot.slane %v214, 7
    %v368 = vrot.slane %v215, 7
    %v369 = vrot.slane %v216, 7
    %vm370 = vcmp.lt.s32.totalorder %v218, 1
    %v371 = vsel %vm370, %v368, %v369
    %v372 = vsel %vm370, %v367, %v368
    %v373 = vsel %vm370, %v366, %v367
    %v374 = vsel %vm370, %v369, %v366
    %v375 = vadd.s32 %v266, 4294967295
    %v376 = vadd.s32 %v267, 4294967295
    %v377 = vadd.s32 %v268, 4294967295
    %v378 = vadd.s32 %v269, 4294967295
    %vm379 = vcmp.ge.s32.totalorder %v375, 0
    %vm380 = vcmp.ge.s32.totalorder %v376, 0
    %vm381 = vcmp.ge.s32.totalorder %v377, 0
    %vm382 = vcmp.ge.s32.totalorder %v378, 0
    %vm383 = vcmp.lt.s32.totalorder %v375, 16
    %vm384 = vcmp.lt.s32.totalorder %v376, 16
    %vm385 = vcmp.lt.s32.totalorder %v377, 16
    %vm386 = vcmp.lt.s32.totalorder %v378, 16
    %vm387 = vmand %vm379, %vm383
    %vm388 = vmand %vm380, %vm384
    %vm389 = vmand %vm381, %vm385
    %vm390 = vmand %vm382, %vm386
    %v391 = vsel %vm387, 1, 0
    %v392 = vsel %vm388, 1, 0
    %v393 = vsel %vm389, 1, 0
    %v394 = vsel %vm390, 1, 0
    %vm395 = vcmp.eq.s32.totalorder %v391, 1
    %vm396 = vcmp.eq.s32.totalorder %v392, 1
    %vm397 = vcmp.eq.s32.totalorder %v393, 1
    %vm398 = vcmp.eq.s32.totalorder %v394, 1
    %v399 = vsel %vm395, %v374, 0.0
    %v400 = vsel %vm396, %v373, 0.0
    %v401 = vsel %vm397, %v372, 0.0
    %v402 = vsel %vm398, %v371, 0.0
    %s403 = scalar_lea.vmem [#allocation2], 64
    %v404 = vld [vmem:[%s403] sm:$0xff]
    %v405 = vld [vmem:[%s403 + $0x8] sm:$0xff]
    %v406 = vld [vmem:[%s403 + $0x10] sm:$0xff]
    %v407 = vld [vmem:[%s403 + $0x18] sm:$0xff]
    %v408 = vld [vmem:[%s403 + $0x20] sm:$0xff]
    %v409 = vld [vmem:[%s403 + $0x28] sm:$0xff]
    %v410 = vld [vmem:[%s403 + $0x30] sm:$0xff]
    %v411 = vld [vmem:[%s403 + $0x38] sm:$0xff]
    %v413 = vsel %vm320, %v399, 0
    %v416 = vsel %vm320, %v400, 0
    %v419 = vsel %vm320, %v401, 0
    %v422 = vsel %vm320, %v402, 0
    %424 = vmatpush.msra.mxu0 0.0
    %425 = vmatpush.msra.mxu0 0.0
    %426 = vmatpush.msra.mxu0 0.0
    %427 = vmatpush.msra.mxu0 0.0
    %428 = vmatpush.msra.mxu0 0.0
    %429 = vmatpush.msra.mxu0 0.0
    %430 = vmatpush.msra.mxu0 0.0
    %431 = vmatpush.msra.mxu0 0.0
    %432 = vmatpush.msra.mxu0 %v411
    %433 = vmatpush.msra.mxu0 %v410
    %434 = vmatpush.msra.mxu0 %v409
    %435 = vmatpush.msra.mxu0 %v408
    %436 = vmatpush.msra.mxu0 %v407
    %437 = vmatpush.msra.mxu0 %v406
    %438 = vmatpush.msra.mxu0 %v405
    %439 = vmatpush.msra.mxu0 %v404
    %440 = vmatmul.f32.gmra.mxu0 %v413
    %v441 = vpop.f32.mrf.mxu0
    %v442 = vadd.f32 0.0, %v441
    %443 = vmatmul.f32.gmra.mxu0 %v416
    %v444 = vpop.f32.mrf.mxu0
    %v445 = vadd.f32 0.0, %v444
    %446 = vmatmul.f32.gmra.mxu0 %v419
    %v447 = vpop.f32.mrf.mxu0
    %v448 = vadd.f32 0.0, %v447
    %449 = vmatmul.f32.gmra.mxu0 %v422
    %v450 = vpop.f32.mrf.mxu0
    %v451 = vadd.f32 0.0, %v450
    %452 = vdwg.mxu0
    %v453 = vadd.f32 %v362, %v442
    %v454 = vadd.f32 %v363, %v445
    %v455 = vadd.f32 %v364, %v448
    %v456 = vadd.f32 %v365, %v451
    %s457 = scalar_lea.vmem [#allocation2], 128
    %v458 = vld [vmem:[%s457] sm:$0xff]
    %v459 = vld [vmem:[%s457 + $0x8] sm:$0xff]
    %v460 = vld [vmem:[%s457 + $0x10] sm:$0xff]
    %v461 = vld [vmem:[%s457 + $0x18] sm:$0xff]
    %v462 = vld [vmem:[%s457 + $0x20] sm:$0xff]
    %v463 = vld [vmem:[%s457 + $0x28] sm:$0xff]
    %v464 = vld [vmem:[%s457 + $0x30] sm:$0xff]
    %v465 = vld [vmem:[%s457 + $0x38] sm:$0xff]
    %v467 = vsel %vm320, %v213, 0
    %v470 = vsel %vm320, %v214, 0
    %v473 = vsel %vm320, %v215, 0
    %v476 = vsel %vm320, %v216, 0
    %478 = vmatpush.msra.mxu0 0.0
    %479 = vmatpush.msra.mxu0 0.0
    %480 = vmatpush.msra.mxu0 0.0
    %481 = vmatpush.msra.mxu0 0.0
    %482 = vmatpush.msra.mxu0 0.0
    %483 = vmatpush.msra.mxu0 0.0
    %484 = vmatpush.msra.mxu0 0.0
    %485 = vmatpush.msra.mxu0 0.0
    %486 = vmatpush.msra.mxu0 %v465
    %487 = vmatpush.msra.mxu0 %v464
    %488 = vmatpush.msra.mxu0 %v463
    %489 = vmatpush.msra.mxu0 %v462
    %490 = vmatpush.msra.mxu0 %v461
    %491 = vmatpush.msra.mxu0 %v460
    %492 = vmatpush.msra.mxu0 %v459
    %493 = vmatpush.msra.mxu0 %v458
    %494 = vmatmul.f32.gmra.mxu0 %v467
    %v495 = vpop.f32.mrf.mxu0
    %v496 = vadd.f32 0.0, %v495
    %497 = vmatmul.f32.gmra.mxu0 %v470
    %v498 = vpop.f32.mrf.mxu0
    %v499 = vadd.f32 0.0, %v498
    %500 = vmatmul.f32.gmra.mxu0 %v473
    %v501 = vpop.f32.mrf.mxu0
    %v502 = vadd.f32 0.0, %v501
    %503 = vmatmul.f32.gmra.mxu0 %v476
    %v504 = vpop.f32.mrf.mxu0
    %v505 = vadd.f32 0.0, %v504
    %506 = vdwg.mxu0
    %v507 = vadd.f32 %v453, %v496
    %v508 = vadd.f32 %v454, %v499
    %v509 = vadd.f32 %v455, %v502
    %v510 = vadd.f32 %v456, %v505
    %v511 = vrot.slane %v213, 1
    %v512 = vrot.slane %v214, 1
    %v513 = vrot.slane %v215, 1
    %v514 = vrot.slane %v216, 1
    %vm515 = vcmp.lt.s32.totalorder %v218, 7
    %v516 = vsel %vm515, %v513, %v514
    %v517 = vsel %vm515, %v512, %v513
    %v518 = vsel %vm515, %v511, %v512
    %v519 = vsel %vm515, %v514, %v511
    %v520 = vadd.s32 %v266, 1
    %v521 = vadd.s32 %v267, 1
    %v522 = vadd.s32 %v268, 1
    %v523 = vadd.s32 %v269, 1
    %vm524 = vcmp.ge.s32.totalorder %v520, 0
    %vm525 = vcmp.ge.s32.totalorder %v521, 0
    %vm526 = vcmp.ge.s32.totalorder %v522, 0
    %vm527 = vcmp.ge.s32.totalorder %v523, 0
    %vm528 = vcmp.lt.s32.totalorder %v520, 16
    %vm529 = vcmp.lt.s32.totalorder %v521, 16
    %vm530 = vcmp.lt.s32.totalorder %v522, 16
    %vm531 = vcmp.lt.s32.totalorder %v523, 16
    %vm532 = vmand %vm524, %vm528
    %vm533 = vmand %vm525, %vm529
    %vm534 = vmand %vm526, %vm530
    %vm535 = vmand %vm527, %vm531
    %v536 = vsel %vm532, 1, 0
    %v537 = vsel %vm533, 1, 0
    %v538 = vsel %vm534, 1, 0
    %v539 = vsel %vm535, 1, 0
    %vm540 = vcmp.eq.s32.totalorder %v536, 1
    %vm541 = vcmp.eq.s32.totalorder %v537, 1
    %vm542 = vcmp.eq.s32.totalorder %v538, 1
    %vm543 = vcmp.eq.s32.totalorder %v539, 1
    %v544 = vsel %vm540, %v518, 0.0
    %v545 = vsel %vm541, %v517, 0.0
    %v546 = vsel %vm542, %v516, 0.0
    %v547 = vsel %vm543, %v519, 0.0
    %s548 = scalar_lea.vmem [#allocation2], 192
    %v549 = vld [vmem:[%s548] sm:$0xff]
    %v550 = vld [vmem:[%s548 + $0x8] sm:$0xff]
    %v551 = vld [vmem:[%s548 + $0x10] sm:$0xff]
    %v552 = vld [vmem:[%s548 + $0x18] sm:$0xff]
    %v553 = vld [vmem:[%s548 + $0x20] sm:$0xff]
    %v554 = vld [vmem:[%s548 + $0x28] sm:$0xff]
    %v555 = vld [vmem:[%s548 + $0x30] sm:$0xff]
    %v556 = vld [vmem:[%s548 + $0x38] sm:$0xff]
    %v558 = vsel %vm320, %v544, 0
    %v561 = vsel %vm320, %v545, 0
    %v564 = vsel %vm320, %v546, 0
    %v567 = vsel %vm320, %v547, 0
    %569 = vmatpush.msra.mxu0 0.0
    %570 = vmatpush.msra.mxu0 0.0
    %571 = vmatpush.msra.mxu0 0.0
    %572 = vmatpush.msra.mxu0 0.0
    %573 = vmatpush.msra.mxu0 0.0
    %574 = vmatpush.msra.mxu0 0.0
    %575 = vmatpush.msra.mxu0 0.0
    %576 = vmatpush.msra.mxu0 0.0
    %577 = vmatpush.msra.mxu0 %v556
    %578 = vmatpush.msra.mxu0 %v555
    %579 = vmatpush.msra.mxu0 %v554
    %580 = vmatpush.msra.mxu0 %v553
    %581 = vmatpush.msra.mxu0 %v552
    %582 = vmatpush.msra.mxu0 %v551
    %583 = vmatpush.msra.mxu0 %v550
    %584 = vmatpush.msra.mxu0 %v549
    %585 = vmatmul.f32.gmra.mxu0 %v558
    %v586 = vpop.f32.mrf.mxu0
    %v587 = vadd.f32 0.0, %v586
    %588 = vmatmul.f32.gmra.mxu0 %v561
    %v589 = vpop.f32.mrf.mxu0
    %v590 = vadd.f32 0.0, %v589
    %591 = vmatmul.f32.gmra.mxu0 %v564
    %v592 = vpop.f32.mrf.mxu0
    %v593 = vadd.f32 0.0, %v592
    %594 = vmatmul.f32.gmra.mxu0 %v567
    %v595 = vpop.f32.mrf.mxu0
    %v596 = vadd.f32 0.0, %v595
    %597 = vdwg.mxu0
    %v598 = vadd.f32 %v507, %v587
    %v599 = vadd.f32 %v508, %v590
    %v600 = vadd.f32 %v509, %v593
    %v601 = vadd.f32 %v510, %v596
    %v602 = vrot.slane %v213, 2
    %v603 = vrot.slane %v214, 2
    %v604 = vrot.slane %v215, 2
    %v605 = vrot.slane %v216, 2
    %vm606 = vcmp.lt.s32.totalorder %v218, 6
    %v607 = vsel %vm606, %v604, %v605
    %v608 = vsel %vm606, %v603, %v604
    %v609 = vsel %vm606, %v602, %v603
    %v610 = vsel %vm606, %v605, %v602
    %v611 = vadd.s32 %v266, 2
    %v612 = vadd.s32 %v267, 2
    %v613 = vadd.s32 %v268, 2
    %v614 = vadd.s32 %v269, 2
    %vm615 = vcmp.ge.s32.totalorder %v611, 0
    %vm616 = vcmp.ge.s32.totalorder %v612, 0
    %vm617 = vcmp.ge.s32.totalorder %v613, 0
    %vm618 = vcmp.ge.s32.totalorder %v614, 0
    %vm619 = vcmp.lt.s32.totalorder %v611, 16
    %vm620 = vcmp.lt.s32.totalorder %v612, 16
    %vm621 = vcmp.lt.s32.totalorder %v613, 16
    %vm622 = vcmp.lt.s32.totalorder %v614, 16
    %vm623 = vmand %vm615, %vm619
    %vm624 = vmand %vm616, %vm620
    %vm625 = vmand %vm617, %vm621
    %vm626 = vmand %vm618, %vm622
    %v627 = vsel %vm623, 1, 0
    %v628 = vsel %vm624, 1, 0
    %v629 = vsel %vm625, 1, 0
    %v630 = vsel %vm626, 1, 0
    %vm631 = vcmp.eq.s32.totalorder %v627, 1
    %vm632 = vcmp.eq.s32.totalorder %v628, 1
    %vm633 = vcmp.eq.s32.totalorder %v629, 1
    %vm634 = vcmp.eq.s32.totalorder %v630, 1
    %v635 = vsel %vm631, %v609, 0.0
    %v636 = vsel %vm632, %v608, 0.0
    %v637 = vsel %vm633, %v607, 0.0
    %v638 = vsel %vm634, %v610, 0.0
    %s639 = scalar_lea.vmem [#allocation2], 256
    %v640 = vld [vmem:[%s639] sm:$0xff]
    %v641 = vld [vmem:[%s639 + $0x8] sm:$0xff]
    %v642 = vld [vmem:[%s639 + $0x10] sm:$0xff]
    %v643 = vld [vmem:[%s639 + $0x18] sm:$0xff]
    %v644 = vld [vmem:[%s639 + $0x20] sm:$0xff]
    %v645 = vld [vmem:[%s639 + $0x28] sm:$0xff]
    %v646 = vld [vmem:[%s639 + $0x30] sm:$0xff]
    %v647 = vld [vmem:[%s639 + $0x38] sm:$0xff]
    %v649 = vsel %vm320, %v635, 0
    %v652 = vsel %vm320, %v636, 0
    %v655 = vsel %vm320, %v637, 0
    %v658 = vsel %vm320, %v638, 0
    %660 = vmatpush.msra.mxu0 0.0
    %661 = vmatpush.msra.mxu0 0.0
    %662 = vmatpush.msra.mxu0 0.0
    %663 = vmatpush.msra.mxu0 0.0
    %664 = vmatpush.msra.mxu0 0.0
    %665 = vmatpush.msra.mxu0 0.0
    %666 = vmatpush.msra.mxu0 0.0
    %667 = vmatpush.msra.mxu0 0.0
    %668 = vmatpush.msra.mxu0 %v647
    %669 = vmatpush.msra.mxu0 %v646
    %670 = vmatpush.msra.mxu0 %v645
    %671 = vmatpush.msra.mxu0 %v644
    %672 = vmatpush.msra.mxu0 %v643
    %673 = vmatpush.msra.mxu0 %v642
    %674 = vmatpush.msra.mxu0 %v641
    %675 = vmatpush.msra.mxu0 %v640
    %676 = vmatmul.f32.gmra.mxu0 %v649
    %v677 = vpop.f32.mrf.mxu0
    %v678 = vadd.f32 0.0, %v677
    %679 = vmatmul.f32.gmra.mxu0 %v652
    %v680 = vpop.f32.mrf.mxu0
    %v681 = vadd.f32 0.0, %v680
    %682 = vmatmul.f32.gmra.mxu0 %v655
    %v683 = vpop.f32.mrf.mxu0
    %v684 = vadd.f32 0.0, %v683
    %685 = vmatmul.f32.gmra.mxu0 %v658
    %v686 = vpop.f32.mrf.mxu0
    %v687 = vadd.f32 0.0, %v686
    %688 = vdwg.mxu0
    %v689 = vadd.f32 %v598, %v678
    %v690 = vadd.f32 %v599, %v681
    %v691 = vadd.f32 %v600, %v684
    %v692 = vadd.f32 %v601, %v687
    %v693 = vand.u32 2147483647, %v689
    %v694 = vand.u32 2147483647, %v690
    %v695 = vand.u32 2147483647, %v691
    %v696 = vand.u32 2147483647, %v692
    %v697 = vsub.f32 0.0, %v693
    %v698 = vsub.f32 0.0, %v694
    %v699 = vsub.f32 0.0, %v695
    %v700 = vsub.f32 0.0, %v696
    %v701 = vmul.f32 %v697, 1.442695
    %v702 = vpow.pop %v701
    %v703 = vmul.f32 %v698, 1.442695
    %v704 = vpow.pop %v703
    %v705 = vmul.f32 %v699, 1.442695
    %v706 = vpow.pop %v705
    %v707 = vmul.f32 %v700, 1.442695
    %v708 = vpow.pop %v707
    %v709 = vmul.f32 %v702, %v702
    %v710 = vmul.f32 %v704, %v704
    %v711 = vmul.f32 %v706, %v706
    %v712 = vmul.f32 %v708, %v708
    %vm713 = vcmp.ge.f32.partialorder %v689, 0.0
    %vm714 = vcmp.ge.f32.partialorder %v690, 0.0
    %vm715 = vcmp.ge.f32.partialorder %v691, 0.0
    %vm716 = vcmp.ge.f32.partialorder %v692, 0.0
    %v717 = vmul.f32 %v702, 2.0
    %v718 = vmul.f32 %v704, 2.0
    %v719 = vmul.f32 %v706, 2.0
    %v720 = vmul.f32 %v708, 2.0
    %v721 = vadd.f32 %v717, 1.0
    %v722 = vadd.f32 %v718, 1.0
    %v723 = vadd.f32 %v719, 1.0
    %v724 = vadd.f32 %v720, 1.0
    %v725 = vadd.f32 %v717, %v709
    %v726 = vadd.f32 %v718, %v710
    %v727 = vadd.f32 %v719, %v711
    %v728 = vadd.f32 %v720, %v712
    %v729 = vsel %vm713, %v721, %v725
    %v730 = vsel %vm714, %v722, %v726
    %v731 = vsel %vm715, %v723, %v727
    %v732 = vsel %vm716, %v724, %v728
    %v733 = vmul.f32 %v709, 2.0
    %v734 = vmul.f32 %v710, 2.0
    %v735 = vmul.f32 %v711, 2.0
    %v736 = vmul.f32 %v712, 2.0
    %v737 = vadd.f32 %v721, %v733
    %v738 = vadd.f32 %v722, %v734
    %v739 = vadd.f32 %v723, %v735
    %v740 = vadd.f32 %v724, %v736
    %v741 = vadd.f32 %v717, 2.0
    %v742 = vadd.f32 %v718, 2.0
    %v743 = vadd.f32 %v719, 2.0
    %v744 = vadd.f32 %v720, 2.0
    %v745 = vadd.f32 %v741, %v709
    %v746 = vadd.f32 %v742, %v710
    %v747 = vadd.f32 %v743, %v711
    %v748 = vadd.f32 %v744, %v712
    %v749 = vsel %vm713, %v737, %v745
    %v750 = vsel %vm714, %v738, %v746
    %v751 = vsel %vm715, %v739, %v747
    %v752 = vsel %vm716, %v740, %v748
    %v753 = vrcp.pop %v749
    %v754 = vmul.f32 %v749, %v753
    %v755 = vsub.f32 1.0, %v754
    %v756 = vmul.f32 %v753, %v755
    %v757 = vadd.f32 %v753, %v756
    %vm758 = vweird.f32 %v749
    %vm759 = vweird.f32 %v753
    %vm760 = vmor %vm758, %vm759
    %v761 = vsel %vm760, %v753, %v757
    %v762 = vand.u32 2147483647, %v749
    %vm763 = vcmp.eq.f32.partialorder %v762, 8.507059e+37
    %v764 = vand.u32 %v749, 2147483648
    %v765 = vor.u32 1.1754944e-38, %v764
    %v766 = vsel %vm763, %v765, %v761
    %v767 = vmul.f32 %v729, %v766
    %v768 = vrcp.pop %v750
    %v769 = vmul.f32 %v750, %v768
    %v770 = vsub.f32 1.0, %v769
    %v771 = vmul.f32 %v768, %v770
    %v772 = vadd.f32 %v768, %v771
    %vm773 = vweird.f32 %v750
    %vm774 = vweird.f32 %v768
    %vm775 = vmor %vm773, %vm774
    %v776 = vsel %vm775, %v768, %v772
    %v777 = vand.u32 2147483647, %v750
    %vm778 = vcmp.eq.f32.partialorder %v777, 8.507059e+37
    %v779 = vand.u32 %v750, 2147483648
    %v780 = vor.u32 1.1754944e-38, %v779
    %v781 = vsel %vm778, %v780, %v776
    %v782 = vmul.f32 %v730, %v781
    %v783 = vrcp.pop %v751
    %v784 = vmul.f32 %v751, %v783
    %v785 = vsub.f32 1.0, %v784
    %v786 = vmul.f32 %v783, %v785
    %v787 = vadd.f32 %v783, %v786
    %vm788 = vweird.f32 %v751
    %vm789 = vweird.f32 %v783
    %vm790 = vmor %vm788, %vm789
    %v791 = vsel %vm790, %v783, %v787
    %v792 = vand.u32 2147483647, %v751
    %vm793 = vcmp.eq.f32.partialorder %v792, 8.507059e+37
    %v794 = vand.u32 %v751, 2147483648
    %v795 = vor.u32 1.1754944e-38, %v794
    %v796 = vsel %vm793, %v795, %v791
    %v797 = vmul.f32 %v731, %v796
    %v798 = vrcp.pop %v752
    %v799 = vmul.f32 %v752, %v798
    %v800 = vsub.f32 1.0, %v799
    %v801 = vmul.f32 %v798, %v800
    %v802 = vadd.f32 %v798, %v801
    %vm803 = vweird.f32 %v752
    %vm804 = vweird.f32 %v798
    %vm805 = vmor %vm803, %vm804
    %v806 = vsel %vm805, %v798, %v802
    %v807 = vand.u32 2147483647, %v752
    %vm808 = vcmp.eq.f32.partialorder %v807, 8.507059e+37
    %v809 = vand.u32 %v752, 2147483648
    %v810 = vor.u32 1.1754944e-38, %v809
    %v811 = vsel %vm808, %v810, %v806
    %v812 = vmul.f32 %v732, %v811
    %v813 = vmul.f32 %v689, %v767
    %v814 = vmul.f32 %v690, %v782
    %v815 = vmul.f32 %v691, %v797
    %v816 = vmul.f32 %v692, %v812
    %821 = vrot.lane.b32.xlu0 %v813, 64
    %v822 = vpop.permute.xlu0 %821
    %823 = vrot.lane.b32.xlu0 %v814, 64
    %v824 = vpop.permute.xlu0 %823
    %825 = vrot.lane.b32.xlu0 %v815, 64
    %v826 = vpop.permute.xlu0 %825
    %827 = vrot.lane.b32.xlu0 %v816, 64
    %v828 = vpop.permute.xlu0 %827
    %v833 = vsel %vm320, %v213, %v822
    %v834 = vsel %vm320, %v214, %v824
    %v835 = vsel %vm320, %v215, %v826
    %v836 = vsel %vm320, %v216, %v828
    %v837 = vld [vmem:[%s5] sm:$0xff]
    %v838 = vld [vmem:[%s5 + $0x8] sm:$0xff]
    %v839 = vld [vmem:[%s5 + $0x10] sm:$0xff]
    %v840 = vld [vmem:[%s5 + $0x18] sm:$0xff]
    %v841 = vld [vmem:[%s5 + $0x20] sm:$0xff]
    %v842 = vld [vmem:[%s5 + $0x28] sm:$0xff]
    %v843 = vld [vmem:[%s5 + $0x30] sm:$0xff]
    %v844 = vld [vmem:[%s5 + $0x38] sm:$0xff]
    %v845 = vld [vmem:[%s5 + $0x40] sm:$0xff]
    %v846 = vld [vmem:[%s5 + $0x48] sm:$0xff]
    %v847 = vld [vmem:[%s5 + $0x50] sm:$0xff]
    %v848 = vld [vmem:[%s5 + $0x58] sm:$0xff]
    %v849 = vld [vmem:[%s5 + $0x60] sm:$0xff]
    %v850 = vld [vmem:[%s5 + $0x68] sm:$0xff]
    %v851 = vld [vmem:[%s5 + $0x70] sm:$0xff]
    %v852 = vld [vmem:[%s5 + $0x78] sm:$0xff]
    %853 = vmatpush.msra.mxu0 %v852
    %854 = vmatpush.msra.mxu0 %v851
    %855 = vmatpush.msra.mxu0 %v850
    %856 = vmatpush.msra.mxu0 %v849
    %857 = vmatpush.msra.mxu0 %v848
    %858 = vmatpush.msra.mxu0 %v847
    %859 = vmatpush.msra.mxu0 %v846
    %860 = vmatpush.msra.mxu0 %v845
    %861 = vmatpush.msra.mxu0 %v844
    %862 = vmatpush.msra.mxu0 %v843
    %863 = vmatpush.msra.mxu0 %v842
    %864 = vmatpush.msra.mxu0 %v841
    %865 = vmatpush.msra.mxu0 %v840
    %866 = vmatpush.msra.mxu0 %v839
    %867 = vmatpush.msra.mxu0 %v838
    %868 = vmatpush.msra.mxu0 %v837
    %869 = vmatmul.f32.gmra.mxu0 %v833
    %v870 = vpop.f32.mrf.mxu0
    %v871 = vadd.f32 0.0, %v870
    %872 = vmatmul.f32.gmra.mxu0 %v834
    %v873 = vpop.f32.mrf.mxu0
    %v874 = vadd.f32 0.0, %v873
    %875 = vmatmul.f32.gmra.mxu0 %v835
    %v876 = vpop.f32.mrf.mxu0
    %v877 = vadd.f32 0.0, %v876
    %878 = vmatmul.f32.gmra.mxu0 %v836
    %v879 = vpop.f32.mrf.mxu0
    %v880 = vadd.f32 0.0, %v879
    %881 = vdwg.mxu0
    %882 = vst [vmem:[#allocation5] sm:$0xff] %v871
    %883 = vst [vmem:[#allocation5 + $0x8] sm:$0xff] %v874
    %884 = vst [vmem:[#allocation5 + $0x10] sm:$0xff] %v877
    %885 = vst [vmem:[#allocation5 + $0x18] sm:$0xff] %v880
    // Predicated region
    $region30: #{tpu_custom_call.1} parent=1 // pred_check
      _
    $region31: #{tpu_custom_call.1} parent=1 // pred_check_branch
      %887 = sbr.rel (0) target = $region33
    $region32: #{tpu_custom_call.1} parent=1 // pred_region
      %889 = vsyncadd [#allocation4], 0
      %s890 = sshll.u32 [#allocation5], 4
      %s891 = int_to_ptr.vmem [resolvable:$true] %s890
      %s892 = sshll.u32 %s6, 4
      %s893 = int_to_ptr.hbm [resolvable:$true] %s892
      %898 = dma.vmem_to_hbm [thread:$0]  %s891, 512, %s893, [#allocation4], 128, 128, 8
    $region33: #{tpu_custom_call.1} parent=1 // pred_fallthru
      _
    // Predicated region
    $region34: #{tpu_custom_call.1} parent=1 // pred_check
      _
    $region35: #{tpu_custom_call.1} parent=1 // pred_check_branch
      %900 = sbr.rel (0) target = $region37
    $region36: #{tpu_custom_call.1} parent=1 // pred_region
      %902 = dma.done [#allocation4], 512
    $region37: #{tpu_custom_call.1} parent=1 // pred_fallthru
      _
    %903 = vsyncpa [#allocation3], 1
    %904 = vsyncpa [#allocation4], 1

</llo_original>
